<compile_context>
chip_gen: v7x
topology: tpu7x:2x2x1
jax: 0.10.0
libtpu: 0.0.40
codegen_flags: <defaults>
</compile_context>

<pallas_src>
import math
import random
import re
from functools import lru_cache

import jax
import jax.numpy as jnp
from jax import lax
from jax.experimental import pallas as pl
from jax.experimental.pallas import tpu as pltpu


# --------------------------------------------------------------------------- #
# Hardware introspection (generation-aware budgets).
# --------------------------------------------------------------------------- #
@lru_cache(maxsize=1)
def _tpu_generation() -> int:
    try:
        kind = jax.devices()[0].device_kind
        m = re.search(r"(\d+)", kind)
        if m:
            return int(m.group(1))
    except Exception:
        pass
    return 6


@lru_cache(maxsize=1)
def _vmem_capacity_bytes() -> int:
    """Per-TensorCore VMEM capacity; min(query, generation heuristic)."""
    gen = _tpu_generation()
    if gen >= 7:
        heur = 64 * 1024 * 1024
    elif gen >= 4:
        heur = 128 * 1024 * 1024
    else:
        heur = 16 * 1024 * 1024
    try:
        cap = getattr(pltpu.get_tpu_info(), "vmem_capacity_bytes", None)
        if cap:
            return int(min(int(cap), heur))
    except Exception:
        pass
    return heur


def _mxu_width() -> int:
    return 256 if _tpu_generation() >= 6 else 128


# --------------------------------------------------------------------------- #
# Inverse-rotation index map (host side, tiny, angle-dependent).
# --------------------------------------------------------------------------- #
def _src_row(cos_t: float, sin_t: float, H: int, W: int) -> jax.Array:
    """(1, H*W) int32 row of source flat indices per destination pixel.

    Out-of-bounds destinations get -1 (never matches a q index -> fill=0).
    Positive angle = counter-clockwise (torchvision convention).
    """
    cx = (W - 1) / 2.0
    cy = (H - 1) / 2.0
    x = jnp.arange(W, dtype=jnp.float32)[None, :]   # (1, W)
    y = jnp.arange(H, dtype=jnp.float32)[:, None]   # (H, 1)
    xc = x - cx
    yc = y - cy
    ix = xc * cos_t - yc * sin_t + cx
    iy = xc * sin_t + yc * cos_t + cy
    ixr = jnp.round(ix)
    iyr = jnp.round(iy)
    inb = (ixr >= 0.0) & (ixr <= W - 1.0) & (iyr >= 0.0) & (iyr <= H - 1.0)
    src = iyr.astype(jnp.int32) * jnp.int32(W) + ixr.astype(jnp.int32)
    src = jnp.where(inb, src, jnp.int32(-1))
    return src.reshape(1, H * W)


# --------------------------------------------------------------------------- #
# Tile selection (VMEM-budget driven).
# --------------------------------------------------------------------------- #
def _round_up(x: int, m: int) -> int:
    return ((x + m - 1) // m) * m


def _largest_aligned_divisor(total: int, cap: int, lane: int) -> int:
    """Largest multiple of `lane` (fallback 128) dividing `total`, <= cap.

    `total` is always a multiple of 128, so the 128 pass always succeeds.
    """
    for align in (lane, 128):
        t = (min(cap, total) // align) * align
        while t >= align:
            if total % t == 0:
                return t
            t -= align
    return 128


def _pick_tiles(M: int, HW: int, in_itemsize: int, compute_itemsize: int,
                vmem_limit: int, mxu: int):
    """Choose (tm, tp) so that
         T scratch (HW*tp*ci) + x double-buffer (2*tm*HW*ii)
         + out double-buffer (2*tm*tp*ii)
       fits in ~70% of the generation-aware VMEM limit."""
    usable = int(vmem_limit * 0.70)

    # Row (MXU-M) tile: fill the MXU (256 on v6e/v7x, 128 on v5e), aligned to
    # the dtype sublane pack; shrink if the (tm, HW) double-buffer dominates.
    pack = max(8, 32 // max(1, in_itemsize))
    tm = min(M, 256 if mxu >= 256 else 128)
    tm = max(pack, (tm // pack) * pack)
    while 2 * tm * HW * in_itemsize > usable // 2 and tm > pack:
        tm = max(pack, tm // 2)

    # Destination-column tile from what is left of the budget.
    left = usable - 2 * tm * HW * in_itemsize
    per_col = HW * compute_itemsize + 2 * tm * in_itemsize + 8
    tp_cap = max(128, left // per_col)
    if tp_cap >= HW:
        tp = HW
    else:
        lane = 256 if mxu >= 256 else 128      # don't underfill the 256 MXU
        tp = _largest_aligned_divisor(HW, int(tp_cap), lane)
    return tm, tp


# --------------------------------------------------------------------------- #
# Kernel builder (one compiled kernel per (M, HW, dtype); angle-independent).
# --------------------------------------------------------------------------- #
@lru_cache(maxsize=None)
def _build_rotate_call(M: int, HW: int, dtype_name: str, tiles=None):
    """Returns a jitted pallas_call: (src (1,HW) int32, x (M,HW)) -> (M,HW).

    M is a multiple of the dtype sublane pack; HW is a multiple of 128.
    """
    in_dtype = jnp.dtype(dtype_name)
    if in_dtype in (jnp.dtype(jnp.bfloat16), jnp.dtype(jnp.float16)):
        compute_dtype = jnp.bfloat16      # T is exactly {0,1}: lossless
    else:
        compute_dtype = jnp.float32
    ci = jnp.dtype(compute_dtype).itemsize
    ii = in_dtype.itemsize

    mxu = _mxu_width()
    vmem_limit = (_vmem_capacity_bytes() * 13) // 16   # ~81% of physical
    if tiles is not None:
        tm, tp = tiles
    else:
        tm, tp = _pick_tiles(M, HW, ii, ci, vmem_limit, mxu)

    grid = (pl.cdiv(M, tm), pl.cdiv(HW, tp))           # (row-tiles, p-chunks)

    def kernel(src_ref, x_ref, o_ref, t_ref):
        # One-hot selection matrix T[q, p_local] = (q == src[p]) for this
        # p-chunk.  Rebuilt unconditionally each step: cheap VPU work next to
        # the MXU matmul, and safe under any megacore split of either axis.
        q = lax.broadcasted_iota(jnp.int32, (HW, tp), 0)
        t_ref[...] = (q == src_ref[...]).astype(compute_dtype)

        xin = x_ref[...].astype(compute_dtype)          # (tm, HW)
        out = jnp.dot(xin, t_ref[...],                  # (tm, tp) on the MXU
                      preferred_element_type=jnp.float32)
        o_ref[...] = out.astype(o_ref.dtype)

    call = pl.pallas_call(
        kernel,
        out_shape=jax.ShapeDtypeStruct((M, HW), in_dtype),
        grid_spec=pltpu.PrefetchScalarGridSpec(
            num_scalar_prefetch=0,
            grid=grid,
            in_specs=[
                # src chunk for this p-chunk (tiny).
                pl.BlockSpec((1, tp), lambda m, p: (0, p)),
                # Image rows: block index invariant over the inner p axis, so
                # the (tm, HW) tile is DMA'd from HBM once per row tile.
                pl.BlockSpec((tm, HW), lambda m, p: (m, 0)),
            ],
            out_specs=pl.BlockSpec((tm, tp), lambda m, p: (m, p)),
            scratch_shapes=[pltpu.VMEM((HW, tp), compute_dtype)],
        ),
        compiler_params=pltpu.CompilerParams(
            dimension_semantics=("parallel", "parallel"),
            vmem_limit_bytes=int(vmem_limit),
        ),
    )
    return jax.jit(call)


# --------------------------------------------------------------------------- #
# Public wrapper.
# --------------------------------------------------------------------------- #
def rotate_pallas(img: jax.Array, angle: float, *, _tiles=None) -> jax.Array:
    """Rotate an NCHW image batch by `angle` degrees (CCW), nearest, fill=0."""
    N, C, H, W = img.shape
    HW = H * W
    M = N * C
    theta = math.radians(float(angle))
    src = _src_row(math.cos(theta), math.sin(theta), H, W)   # (1, HW) int32

    in_dtype = jnp.dtype(img.dtype)
    pack = max(8, 32 // max(1, in_dtype.itemsize))   # 8 f32 / 16 bf16 / 32 i8
    M_pad = _round_up(M, pack)
    HW_pad = _round_up(HW, 128)

    x2d = img.reshape(M, HW)
    if M_pad != M or HW_pad != HW:
        x2d = jnp.pad(x2d, ((0, M_pad - M), (0, HW_pad - HW)))
    if HW_pad != HW:
        # Padded destination columns map to no source pixel (-1 -> fill 0).
        src = jnp.pad(src, ((0, 0), (0, HW_pad - HW)), constant_values=-1)

    call = _build_rotate_call(M_pad, HW_pad, in_dtype.name, _tiles)
    out = call(src, x2d)
    if M_pad != M or HW_pad != HW:
        out = out[:M, :HW]
    return out.reshape(N, C, H, W)


def _reference_rotate(img: jax.Array, angle: float) -> jax.Array:
    """Pure-JAX gather reference with identical index math (for self-checks)."""
    N, C, H, W = img.shape
    theta = math.radians(float(angle))
    src = _src_row(math.cos(theta), math.sin(theta), H, W)[0]   # (HW,) int32
    idx = jnp.clip(src, 0)
    flat = img.reshape(N, C, H * W)
    gathered = jnp.take(flat, idx, axis=-1)
    out = jnp.where(src >= 0, gathered, jnp.zeros((), img.dtype))
    return out.astype(img.dtype).reshape(N, C, H, W)


class RandomRotationPallas:
    """Pallas port of the PyTorch RandomRotation module."""

    def __init__(self, degrees, seed: int = 0):
        self.degrees = list(degrees)
        # Deterministic stand-in for Python's global `random.choice`.
        self._rng = random.Random(seed)

    def __call__(self, *imgs):
        angle = self._rng.choice(self.degrees)
        return tuple(rotate_pallas(img, angle) for img in imgs)

    def __repr__(self) -> str:
        return f"{self.__class__.__name__}(degrees={self.degrees})"


if __name__ == "__main__":
    key = jax.random.PRNGKey(0)
    k1, k2, k3, k4, k5 = jax.random.split(key, 5)
    img0 = jax.random.normal(k1, (2, 4, 16, 16), dtype=jnp.float32)
    img1 = jax.random.normal(k2, (2, 4, 16, 16), dtype=jnp.float32)

    module = RandomRotationPallas(degrees=[0, 90, 180, 270], seed=0)
    outs = jax.block_until_ready(module(img0, img1))
    assert len(outs) == 2
    assert outs[0].shape == img0.shape and outs[0].dtype == img0.dtype

    # Self-check: 90-degree CCW rotation (square images) must equal rot90.
    r90 = jax.block_until_ready(rotate_pallas(img0, 90.0))
    ref90 = jnp.rot90(img0, k=1, axes=(-2, -1))
    assert jnp.allclose(r90, ref90, atol=1e-5), "90-degree rotation mismatch"

    # Self-check: 0-degree rotation is identity.
    r0 = jax.block_until_ready(rotate_pallas(img1, 0.0))
    assert jnp.allclose(r0, img1, atol=1e-6), "0-degree rotation mismatch"

    # Self-check: arbitrary angle matches the pure-JAX gather reference.
    r30 = jax.block_until_ready(rotate_pallas(img0, 30.0))
    assert jnp.allclose(r30, _reference_rotate(img0, 30.0), atol=1e-5), \
        "30-degree rotation mismatch"

    # bf16 input with M (= 3) padded up to the 16-row sublane pack.
    img_bf = jax.random.normal(k3, (1, 3, 16, 16), dtype=jnp.bfloat16)
    rb = jax.block_until_ready(rotate_pallas(img_bf, 270.0))
    assert rb.dtype == jnp.bfloat16
    assert jnp.allclose(rb.astype(jnp.float32),
                        _reference_rotate(img_bf, 270.0).astype(jnp.float32)), \
        "bf16 270-degree rotation mismatch"

    # Odd spatial size (HW = 225 -> padded to 256 lanes in the wrapper).
    img_odd = jax.random.normal(k4, (1, 2, 15, 15), dtype=jnp.float32)
    r45 = jax.block_until_ready(rotate_pallas(img_odd, 45.0))
    assert jnp.allclose(r45, _reference_rotate(img_odd, 45.0), atol=1e-5), \
        "odd-size 45-degree rotation mismatch"

    # Forced multi-chunk destination tiling (tp < HW) to exercise the
    # budget-constrained path used for larger images.
    img_big = jax.random.normal(k5, (2, 3, 48, 48), dtype=jnp.float32)
    rt = jax.block_until_ready(rotate_pallas(img_big, 33.0, _tiles=(8, 256)))
    assert jnp.allclose(rt, _reference_rotate(img_big, 33.0), atol=1e-5), \
        "tiled 33-degree rotation mismatch"

    print("KERNEL_OK")
</pallas_src>

<mosaic_0001>
module attributes {stable_mosaic.version = 11 : i64} {
  func.func @kernel(%arg0: i32, %arg1: i32, %arg2: memref<1x256xi32, #tpu.memory_space<vmem>>, %arg3: memref<8x256xf32, #tpu.memory_space<vmem>>, %arg4: memref<8x256xf32, #tpu.memory_space<vmem>>, %arg5: memref<256x256xf32, #tpu.memory_space<vmem>>) attributes {dimension_semantics = [#tpu.dimension_semantics<parallel>, #tpu.dimension_semantics<parallel>], iteration_bounds = array<i64: 1, 1>, scalar_prefetch = 0 : i64, scratch_operands = 1 : i64, tpu.core_type = #tpu.core_type<tc>, window_params = [{transform_indices = @transform_0, window_bounds = array<i64: 1, 256>}, {transform_indices = @transform_1, window_bounds = array<i64: 8, 256>}, {transform_indices = @transform_2, window_bounds = array<i64: 8, 256>}]} {
    %0 = tpu.iota {dimensions = array<i32: 0>} : vector<256x256xi32>
    %c0 = arith.constant 0 : index
    %c0_0 = arith.constant 0 : index
    %1 = vector.load %arg2[%c0, %c0_0] : memref<1x256xi32, #tpu.memory_space<vmem>>, vector<1x256xi32>
    %2 = vector.broadcast %1 : vector<1x256xi32> to vector<256x256xi32>
    %3 = arith.cmpi eq, %0, %2 : vector<256x256xi32>
    %4 = arith.extui %3 : vector<256x256xi1> to vector<256x256xi32>
    %5 = arith.sitofp %4 : vector<256x256xi32> to vector<256x256xf32>
    %c0_1 = arith.constant 0 : index
    %c0_2 = arith.constant 0 : index
    %6 = vector.load %arg5[%c0_1, %c0_2] : memref<256x256xf32, #tpu.memory_space<vmem>>, vector<256x256xf32>
    tpu.vector_store %arg5[%c0_1, %c0_2], %5 {strides = array<i32>} : memref<256x256xf32, #tpu.memory_space<vmem>>, vector<256x256xf32>,
    %c0_3 = arith.constant 0 : index
    %c0_4 = arith.constant 0 : index
    %7 = vector.load %arg3[%c0_3, %c0_4] : memref<8x256xf32, #tpu.memory_space<vmem>>, vector<8x256xf32>
    %c0_5 = arith.constant 0 : index
    %c0_6 = arith.constant 0 : index
    %8 = vector.load %arg5[%c0_5, %c0_6] : memref<256x256xf32, #tpu.memory_space<vmem>>, vector<256x256xf32>
    %cst = arith.constant dense<0.000000e+00> : vector<8x256xf32>
    %9 = tpu.matmul %7, %8, %cst {dimension_numbers = #tpu.dot_dimension_numbers<[1], [0], [0], [1], [0, 0, 1, 1], [], []>} : vector<8x256xf32>, vector<256x256xf32>, vector<8x256xf32> -> vector<8x256xf32>
    %c0_7 = arith.constant 0 : index
    %c0_8 = arith.constant 0 : index
    %10 = vector.load %arg4[%c0_7, %c0_8] : memref<8x256xf32, #tpu.memory_space<vmem>>, vector<8x256xf32>
    tpu.vector_store %arg4[%c0_7, %c0_8], %9 {strides = array<i32>} : memref<8x256xf32, #tpu.memory_space<vmem>>, vector<8x256xf32>,
    return
  }
  func.func @transform_0(%arg0: i32, %arg1: i32) -> (i32, i32) {
    %c0_i32 = arith.constant 0 : i32
    %c0_i32_0 = arith.constant 0 : i32
    return %c0_i32, %arg1 : i32, i32
  }
  func.func @transform_1(%arg0: i32, %arg1: i32) -> (i32, i32) {
    %c0_i32 = arith.constant 0 : i32
    %c0_i32_0 = arith.constant 0 : i32
    return %arg0, %c0_i32 : i32, i32
  }
  func.func @transform_2(%arg0: i32, %arg1: i32) -> (i32, i32) {
    %c0_i32 = arith.constant 0 : i32
    return %arg0, %arg1 : i32, i32
  }
}

</mosaic_0001>

<llo_original>
// kernel: tpu_custom_call.1
$region0: #{tpu_custom_call.1}
  #allocation0 [shape = 'u32[]', space=smem, size = 0x4, offset = 0x4, fixed_abs, tag = 'smem constant byte address 0x4 - core index']
  #allocation1 [shape = 'u32[144,128]{1,0:T(1,128)}', space=vmem, size = 0x12000, scoped, tag = 'internal scratch']
  #allocation2 [shape = 'f32[256,256]{1,0:T(8,128)}', space=vmem, size = 0x40000, scoped, tag = 'scratch operand']
  %s0 = inlined_call_operand.hbm [shape: s32[1,256], index: 0, kind: input, shape index: {}]
  %s1 = inlined_call_operand.hbm [shape: f32[8,256], index: 1, kind: input, shape index: {}]
  %s2 = inlined_call_operand.hbm [shape: f32[8,256], index: 2, kind: output, shape index: {}]
  %s3 = sld [smem:[#allocation0]]
  $region26: #{tpu_custom_call.1} parent=0
    _
  %s5 = ssub.s32 1, %s3
  %s6 = scalar_select 0, %s5, %s3
  $region1: #{tpu_custom_call.1} parent=0
    #allocation3 [shape = 'u8[1024]{0}', space=vmem, size = 0x400, scoped, tag = 'input window, operand 0, single buffered']
    #allocation4 [shape = 's32[1]{0}', space=sflag, size = 0x4, scoped, tag = 'scoped memory for tpu_custom_call.1']
    #allocation5 [shape = 's32[1]{0}', space=sflag, size = 0x4, scoped, tag = 'scoped memory for tpu_custom_call.1']
    #allocation6 [shape = 'u8[8192]{0}', space=vmem, size = 0x2000, scoped, tag = 'input window, operand 1, single buffered']
    #allocation7 [shape = 's32[1]{0}', space=sflag, size = 0x4, scoped, tag = 'scoped memory for tpu_custom_call.1']
    #allocation8 [shape = 'u8[8192]{0}', space=vmem, size = 0x2000, scoped, tag = 'output window, operand 0, single buffered']
    %7 = vsyncpa [#allocation4], 0
    %8 = vsyncpa [#allocation7], 0
    %9 = vsyncpa [#allocation5], 0
    // Predicated region
    $region2: #{tpu_custom_call.1} parent=1 // pred_check
      _
    $region3: #{tpu_custom_call.1} parent=1 // pred_check_branch
      %11 = sbr.rel (0) target = $region5
    $region4: #{tpu_custom_call.1} parent=1 // pred_region
      %s13 = ssub.s32 32, 32
      %14 = vsyncadd [#allocation4], %s13
      %s16 = sshll.u32 [#allocation3], 4
      %s17 = int_to_ptr.vmem [resolvable:$true] %s16
      %19 = dma.hbm_to_vmem [thread:$0]  %s0, 32, %s17, [#allocation4]
    $region5: #{tpu_custom_call.1} parent=1 // pred_fallthru
      _
    // Predicated region
    $region6: #{tpu_custom_call.1} parent=1 // pred_check
      _
    $region7: #{tpu_custom_call.1} parent=1 // pred_check_branch
      %21 = sbr.rel (0) target = $region9
    $region8: #{tpu_custom_call.1} parent=1 // pred_region
      %s23 = ssub.s32 256, 256
      %24 = vsyncadd [#allocation7], %s23
      %s26 = sshll.u32 [#allocation6], 4
      %s27 = int_to_ptr.vmem [resolvable:$true] %s26
      %29 = dma.hbm_to_vmem [thread:$0]  %s1, 256, %s27, [#allocation7]
    $region9: #{tpu_custom_call.1} parent=1 // pred_fallthru
      _
    // Predicated region
    $region10: #{tpu_custom_call.1} parent=1 // pred_check
      _
    $region11: #{tpu_custom_call.1} parent=1 // pred_check_branch
      %31 = sbr.rel (0) target = $region13
    $region12: #{tpu_custom_call.1} parent=1 // pred_region
      %32 = dma.done [#allocation4], 32
    $region13: #{tpu_custom_call.1} parent=1 // pred_fallthru
      _
    // Predicated region
    $region14: #{tpu_custom_call.1} parent=1 // pred_check
      _
    $region15: #{tpu_custom_call.1} parent=1 // pred_check_branch
      %34 = sbr.rel (0) target = $region17
    $region16: #{tpu_custom_call.1} parent=1 // pred_region
      %35 = dma.done [#allocation7], 256
    $region17: #{tpu_custom_call.1} parent=1 // pred_fallthru
      _
    %v36 = vlaneseq
    %v37 = vshrl.u32 %v36, 7
    %v38 = vadd.s32 %v37, 8
    %v39 = vadd.s32 %v37, 16
    %v40 = vadd.s32 %v37, 24
    %v41 = vadd.s32 %v37, 32
    %v42 = vadd.s32 %v37, 40
    %v43 = vadd.s32 %v37, 48
    %v44 = vadd.s32 %v37, 56
    %v45 = vadd.s32 %v37, 64
    %v46 = vadd.s32 %v37, 72
    %v47 = vadd.s32 %v37, 80
    %v48 = vadd.s32 %v37, 88
    %v49 = vadd.s32 %v37, 96
    %v50 = vadd.s32 %v37, 104
    %v51 = vadd.s32 %v37, 112
    %v52 = vadd.s32 %v37, 120
    %v53 = vadd.s32 %v37, 128
    %v54 = vadd.s32 %v37, 136
    %v55 = vadd.s32 %v37, 144
    %v56 = vadd.s32 %v37, 152
    %v57 = vadd.s32 %v37, 160
    %v58 = vadd.s32 %v37, 168
    %v59 = vadd.s32 %v37, 176
    %v60 = vadd.s32 %v37, 184
    %v61 = vadd.s32 %v37, 192
    %v62 = vadd.s32 %v37, 200
    %v63 = vadd.s32 %v37, 208
    %v64 = vadd.s32 %v37, 216
    %v65 = vadd.s32 %v37, 224
    %v66 = vadd.s32 %v37, 232
    %v67 = vadd.s32 %v37, 240
    %v68 = vadd.s32 %v37, 248
    %v69 = vld [vmem:[#allocation3] sm:$0x3]
    %v70 = vlaneseq
    %v71 = vshrl.u32 %v70, 7
    %v72 = vsub.s32 0, %v71
    %v73 = vrot.slane %v69, %v72
    %v74 = vlaneseq
    %v75 = vshrl.u32 %v74, 7
    %v76 = vsub.s32 1, %v75
    %v77 = vrot.slane %v69, %v76
    %vm78 = vcmp.eq.s32.totalorder %v37, %v73
    %vm79 = vcmp.eq.s32.totalorder %v37, %v77
    %vm80 = vcmp.eq.s32.totalorder %v38, %v73
    %vm81 = vcmp.eq.s32.totalorder %v38, %v77
    %vm82 = vcmp.eq.s32.totalorder %v39, %v73
    %vm83 = vcmp.eq.s32.totalorder %v39, %v77
    %vm84 = vcmp.eq.s32.totalorder %v40, %v73
    %vm85 = vcmp.eq.s32.totalorder %v40, %v77
    %vm86 = vcmp.eq.s32.totalorder %v41, %v73
    %vm87 = vcmp.eq.s32.totalorder %v41, %v77
    %vm88 = vcmp.eq.s32.totalorder %v42, %v73
    %vm89 = vcmp.eq.s32.totalorder %v42, %v77
    %vm90 = vcmp.eq.s32.totalorder %v43, %v73
    %vm91 = vcmp.eq.s32.totalorder %v43, %v77
    %vm92 = vcmp.eq.s32.totalorder %v44, %v73
    %vm93 = vcmp.eq.s32.totalorder %v44, %v77
    %vm94 = vcmp.eq.s32.totalorder %v45, %v73
    %vm95 = vcmp.eq.s32.totalorder %v45, %v77
    %vm96 = vcmp.eq.s32.totalorder %v46, %v73
    %vm97 = vcmp.eq.s32.totalorder %v46, %v77
    %vm98 = vcmp.eq.s32.totalorder %v47, %v73
    %vm99 = vcmp.eq.s32.totalorder %v47, %v77
    %vm100 = vcmp.eq.s32.totalorder %v48, %v73
    %vm101 = vcmp.eq.s32.totalorder %v48, %v77
    %vm102 = vcmp.eq.s32.totalorder %v49, %v73
    %vm103 = vcmp.eq.s32.totalorder %v49, %v77
    %vm104 = vcmp.eq.s32.totalorder %v50, %v73
    %vm105 = vcmp.eq.s32.totalorder %v50, %v77
    %vm106 = vcmp.eq.s32.totalorder %v51, %v73
    %vm107 = vcmp.eq.s32.totalorder %v51, %v77
    %vm108 = vcmp.eq.s32.totalorder %v52, %v73
    %vm109 = vcmp.eq.s32.totalorder %v52, %v77
    %vm110 = vcmp.eq.s32.totalorder %v53, %v73
    %vm111 = vcmp.eq.s32.totalorder %v53, %v77
    %vm112 = vcmp.eq.s32.totalorder %v54, %v73
    %vm113 = vcmp.eq.s32.totalorder %v54, %v77
    %vm114 = vcmp.eq.s32.totalorder %v55, %v73
    %vm115 = vcmp.eq.s32.totalorder %v55, %v77
    %vm116 = vcmp.eq.s32.totalorder %v56, %v73
    %vm117 = vcmp.eq.s32.totalorder %v56, %v77
    %vm118 = vcmp.eq.s32.totalorder %v57, %v73
    %vm119 = vcmp.eq.s32.totalorder %v57, %v77
    %vm120 = vcmp.eq.s32.totalorder %v58, %v73
    %vm121 = vcmp.eq.s32.totalorder %v58, %v77
    %vm122 = vcmp.eq.s32.totalorder %v59, %v73
    %vm123 = vcmp.eq.s32.totalorder %v59, %v77
    %vm124 = vcmp.eq.s32.totalorder %v60, %v73
    %vm125 = vcmp.eq.s32.totalorder %v60, %v77
    %vm126 = vcmp.eq.s32.totalorder %v61, %v73
    %vm127 = vcmp.eq.s32.totalorder %v61, %v77
    %vm128 = vcmp.eq.s32.totalorder %v62, %v73
    %vm129 = vcmp.eq.s32.totalorder %v62, %v77
    %vm130 = vcmp.eq.s32.totalorder %v63, %v73
    %vm131 = vcmp.eq.s32.totalorder %v63, %v77
    %vm132 = vcmp.eq.s32.totalorder %v64, %v73
    %vm133 = vcmp.eq.s32.totalorder %v64, %v77
    %vm134 = vcmp.eq.s32.totalorder %v65, %v73
    %vm135 = vcmp.eq.s32.totalorder %v65, %v77
    %vm136 = vcmp.eq.s32.totalorder %v66, %v73
    %vm137 = vcmp.eq.s32.totalorder %v66, %v77
    %vm138 = vcmp.eq.s32.totalorder %v67, %v73
    %vm139 = vcmp.eq.s32.totalorder %v67, %v77
    %vm140 = vcmp.eq.s32.totalorder %v68, %v73
    %vm141 = vcmp.eq.s32.totalorder %v68, %v77
    %v142 = vsel %vm78, 1, 0
    %v143 = vsel %vm79, 1, 0
    %v144 = vsel %vm80, 1, 0
    %v145 = vsel %vm81, 1, 0
    %v146 = vsel %vm82, 1, 0
    %v147 = vsel %vm83, 1, 0
    %v148 = vsel %vm84, 1, 0
    %v149 = vsel %vm85, 1, 0
    %v150 = vsel %vm86, 1, 0
    %v151 = vsel %vm87, 1, 0
    %v152 = vsel %vm88, 1, 0
    %v153 = vsel %vm89, 1, 0
    %v154 = vsel %vm90, 1, 0
    %v155 = vsel %vm91, 1, 0
    %v156 = vsel %vm92, 1, 0
    %v157 = vsel %vm93, 1, 0
    %v158 = vsel %vm94, 1, 0
    %v159 = vsel %vm95, 1, 0
    %v160 = vsel %vm96, 1, 0
    %v161 = vsel %vm97, 1, 0
    %v162 = vsel %vm98, 1, 0
    %v163 = vsel %vm99, 1, 0
    %v164 = vsel %vm100, 1, 0
    %v165 = vsel %vm101, 1, 0
    %v166 = vsel %vm102, 1, 0
    %v167 = vsel %vm103, 1, 0
    %v168 = vsel %vm104, 1, 0
    %v169 = vsel %vm105, 1, 0
    %v170 = vsel %vm106, 1, 0
    %v171 = vsel %vm107, 1, 0
    %v172 = vsel %vm108, 1, 0
    %v173 = vsel %vm109, 1, 0
    %v174 = vsel %vm110, 1, 0
    %v175 = vsel %vm111, 1, 0
    %v176 = vsel %vm112, 1, 0
    %v177 = vsel %vm113, 1, 0
    %v178 = vsel %vm114, 1, 0
    %v179 = vsel %vm115, 1, 0
    %v180 = vsel %vm116, 1, 0
    %v181 = vsel %vm117, 1, 0
    %v182 = vsel %vm118, 1, 0
    %v183 = vsel %vm119, 1, 0
    %v184 = vsel %vm120, 1, 0
    %v185 = vsel %vm121, 1, 0
    %v186 = vsel %vm122, 1, 0
    %v187 = vsel %vm123, 1, 0
    %v188 = vsel %vm124, 1, 0
    %v189 = vsel %vm125, 1, 0
    %v190 = vsel %vm126, 1, 0
    %v191 = vsel %vm127, 1, 0
    %v192 = vsel %vm128, 1, 0
    %v193 = vsel %vm129, 1, 0
    %v194 = vsel %vm130, 1, 0
    %v195 = vsel %vm131, 1, 0
    %v196 = vsel %vm132, 1, 0
    %v197 = vsel %vm133, 1, 0
    %v198 = vsel %vm134, 1, 0
    %v199 = vsel %vm135, 1, 0
    %v200 = vsel %vm136, 1, 0
    %v201 = vsel %vm137, 1, 0
    %v202 = vsel %vm138, 1, 0
    %v203 = vsel %vm139, 1, 0
    %v204 = vsel %vm140, 1, 0
    %v205 = vsel %vm141, 1, 0
    %v206 = vcvt.s32.f32 %v142
    %v207 = vcvt.s32.f32 %v143
    %v208 = vcvt.s32.f32 %v144
    %v209 = vcvt.s32.f32 %v145
    %v210 = vcvt.s32.f32 %v146
    %v211 = vcvt.s32.f32 %v147
    %v212 = vcvt.s32.f32 %v148
    %v213 = vcvt.s32.f32 %v149
    %v214 = vcvt.s32.f32 %v150
    %v215 = vcvt.s32.f32 %v151
    %v216 = vcvt.s32.f32 %v152
    %v217 = vcvt.s32.f32 %v153
    %v218 = vcvt.s32.f32 %v154
    %v219 = vcvt.s32.f32 %v155
    %v220 = vcvt.s32.f32 %v156
    %v221 = vcvt.s32.f32 %v157
    %v222 = vcvt.s32.f32 %v158
    %v223 = vcvt.s32.f32 %v159
    %v224 = vcvt.s32.f32 %v160
    %v225 = vcvt.s32.f32 %v161
    %v226 = vcvt.s32.f32 %v162
    %v227 = vcvt.s32.f32 %v163
    %v228 = vcvt.s32.f32 %v164
    %v229 = vcvt.s32.f32 %v165
    %v230 = vcvt.s32.f32 %v166
    %v231 = vcvt.s32.f32 %v167
    %v232 = vcvt.s32.f32 %v168
    %v233 = vcvt.s32.f32 %v169
    %v234 = vcvt.s32.f32 %v170
    %v235 = vcvt.s32.f32 %v171
    %v236 = vcvt.s32.f32 %v172
    %v237 = vcvt.s32.f32 %v173
    %v238 = vcvt.s32.f32 %v174
    %v239 = vcvt.s32.f32 %v175
    %v240 = vcvt.s32.f32 %v176
    %v241 = vcvt.s32.f32 %v177
    %v242 = vcvt.s32.f32 %v178
    %v243 = vcvt.s32.f32 %v179
    %v244 = vcvt.s32.f32 %v180
    %v245 = vcvt.s32.f32 %v181
    %v246 = vcvt.s32.f32 %v182
    %v247 = vcvt.s32.f32 %v183
    %v248 = vcvt.s32.f32 %v184
    %v249 = vcvt.s32.f32 %v185
    %v250 = vcvt.s32.f32 %v186
    %v251 = vcvt.s32.f32 %v187
    %v252 = vcvt.s32.f32 %v188
    %v253 = vcvt.s32.f32 %v189
    %v254 = vcvt.s32.f32 %v190
    %v255 = vcvt.s32.f32 %v191
    %v256 = vcvt.s32.f32 %v192
    %v257 = vcvt.s32.f32 %v193
    %v258 = vcvt.s32.f32 %v194
    %v259 = vcvt.s32.f32 %v195
    %v260 = vcvt.s32.f32 %v196
    %v261 = vcvt.s32.f32 %v197
    %v262 = vcvt.s32.f32 %v198
    %v263 = vcvt.s32.f32 %v199
    %v264 = vcvt.s32.f32 %v200
    %v265 = vcvt.s32.f32 %v201
    %v266 = vcvt.s32.f32 %v202
    %v267 = vcvt.s32.f32 %v203
    %v268 = vcvt.s32.f32 %v204
    %v269 = vcvt.s32.f32 %v205
    %270 = vst [vmem:[#allocation2] sm:$0xff] %v206
    %271 = vst [vmem:[#allocation2 + $0x8] sm:$0xff] %v207
    %272 = vst [vmem:[#allocation2 + $0x10] sm:$0xff] %v208
    %273 = vst [vmem:[#allocation2 + $0x18] sm:$0xff] %v209
    %274 = vst [vmem:[#allocation2 + $0x20] sm:$0xff] %v210
    %275 = vst [vmem:[#allocation2 + $0x28] sm:$0xff] %v211
    %276 = vst [vmem:[#allocation2 + $0x30] sm:$0xff] %v212
    %277 = vst [vmem:[#allocation2 + $0x38] sm:$0xff] %v213
    %278 = vst [vmem:[#allocation2 + $0x40] sm:$0xff] %v214
    %279 = vst [vmem:[#allocation2 + $0x48] sm:$0xff] %v215
    %280 = vst [vmem:[#allocation2 + $0x50] sm:$0xff] %v216
    %281 = vst [vmem:[#allocation2 + $0x58] sm:$0xff] %v217
    %282 = vst [vmem:[#allocation2 + $0x60] sm:$0xff] %v218
    %283 = vst [vmem:[#allocation2 + $0x68] sm:$0xff] %v219
    %284 = vst [vmem:[#allocation2 + $0x70] sm:$0xff] %v220
    %285 = vst [vmem:[#allocation2 + $0x78] sm:$0xff] %v221
    %286 = vst [vmem:[#allocation2 + $0x80] sm:$0xff] %v222
    %287 = vst [vmem:[#allocation2 + $0x88] sm:$0xff] %v223
    %288 = vst [vmem:[#allocation2 + $0x90] sm:$0xff] %v224
    %289 = vst [vmem:[#allocation2 + $0x98] sm:$0xff] %v225
    %290 = vst [vmem:[#allocation2 + $0xa0] sm:$0xff] %v226
    %291 = vst [vmem:[#allocation2 + $0xa8] sm:$0xff] %v227
    %292 = vst [vmem:[#allocation2 + $0xb0] sm:$0xff] %v228
    %293 = vst [vmem:[#allocation2 + $0xb8] sm:$0xff] %v229
    %294 = vst [vmem:[#allocation2 + $0xc0] sm:$0xff] %v230
    %295 = vst [vmem:[#allocation2 + $0xc8] sm:$0xff] %v231
    %296 = vst [vmem:[#allocation2 + $0xd0] sm:$0xff] %v232
    %297 = vst [vmem:[#allocation2 + $0xd8] sm:$0xff] %v233
    %298 = vst [vmem:[#allocation2 + $0xe0] sm:$0xff] %v234
    %299 = vst [vmem:[#allocation2 + $0xe8] sm:$0xff] %v235
    %300 = vst [vmem:[#allocation2 + $0xf0] sm:$0xff] %v236
    %301 = vst [vmem:[#allocation2 + $0xf8] sm:$0xff] %v237
    %302 = vst [vmem:[#allocation2 + $0x100] sm:$0xff] %v238
    %303 = vst [vmem:[#allocation2 + $0x108] sm:$0xff] %v239
    %304 = vst [vmem:[#allocation2 + $0x110] sm:$0xff] %v240
    %305 = vst [vmem:[#allocation2 + $0x118] sm:$0xff] %v241
    %306 = vst [vmem:[#allocation2 + $0x120] sm:$0xff] %v242
    %307 = vst [vmem:[#allocation2 + $0x128] sm:$0xff] %v243
    %308 = vst [vmem:[#allocation2 + $0x130] sm:$0xff] %v244
    %309 = vst [vmem:[#allocation2 + $0x138] sm:$0xff] %v245
    %310 = vst [vmem:[#allocation2 + $0x140] sm:$0xff] %v246
    %311 = vst [vmem:[#allocation2 + $0x148] sm:$0xff] %v247
    %312 = vst [vmem:[#allocation2 + $0x150] sm:$0xff] %v248
    %313 = vst [vmem:[#allocation2 + $0x158] sm:$0xff] %v249
    %314 = vst [vmem:[#allocation2 + $0x160] sm:$0xff] %v250
    %315 = vst [vmem:[#allocation2 + $0x168] sm:$0xff] %v251
    %316 = vst [vmem:[#allocation2 + $0x170] sm:$0xff] %v252
    %317 = vst [vmem:[#allocation2 + $0x178] sm:$0xff] %v253
    %318 = vst [vmem:[#allocation2 + $0x180] sm:$0xff] %v254
    %319 = vst [vmem:[#allocation2 + $0x188] sm:$0xff] %v255
    %320 = vst [vmem:[#allocation2 + $0x190] sm:$0xff] %v256
    %321 = vst [vmem:[#allocation2 + $0x198] sm:$0xff] %v257
    %322 = vst [vmem:[#allocation2 + $0x1a0] sm:$0xff] %v258
    %323 = vst [vmem:[#allocation2 + $0x1a8] sm:$0xff] %v259
    %324 = vst [vmem:[#allocation2 + $0x1b0] sm:$0xff] %v260
    %325 = vst [vmem:[#allocation2 + $0x1b8] sm:$0xff] %v261
    %326 = vst [vmem:[#allocation2 + $0x1c0] sm:$0xff] %v262
    %327 = vst [vmem:[#allocation2 + $0x1c8] sm:$0xff] %v263
    %328 = vst [vmem:[#allocation2 + $0x1d0] sm:$0xff] %v264
    %329 = vst [vmem:[#allocation2 + $0x1d8] sm:$0xff] %v265
    %330 = vst [vmem:[#allocation2 + $0x1e0] sm:$0xff] %v266
    %331 = vst [vmem:[#allocation2 + $0x1e8] sm:$0xff] %v267
    %332 = vst [vmem:[#allocation2 + $0x1f0] sm:$0xff] %v268
    %333 = vst [vmem:[#allocation2 + $0x1f8] sm:$0xff] %v269
    %v334 = vld [vmem:[#allocation6] sm:$0xff]
    %v335 = vld [vmem:[#allocation6 + $0x8] sm:$0xff]
    %v336 = vld [vmem:[#allocation2] sm:$0xff]
    %v337 = vld [vmem:[#allocation2 + $0x8] sm:$0xff]
    %v338 = vld [vmem:[#allocation2 + $0x10] sm:$0xff]
    %v339 = vld [vmem:[#allocation2 + $0x18] sm:$0xff]
    %v340 = vld [vmem:[#allocation2 + $0x20] sm:$0xff]
    %v341 = vld [vmem:[#allocation2 + $0x28] sm:$0xff]
    %v342 = vld [vmem:[#allocation2 + $0x30] sm:$0xff]
    %v343 = vld [vmem:[#allocation2 + $0x38] sm:$0xff]
    %v344 = vld [vmem:[#allocation2 + $0x40] sm:$0xff]
    %v345 = vld [vmem:[#allocation2 + $0x48] sm:$0xff]
    %v346 = vld [vmem:[#allocation2 + $0x50] sm:$0xff]
    %v347 = vld [vmem:[#allocation2 + $0x58] sm:$0xff]
    %v348 = vld [vmem:[#allocation2 + $0x60] sm:$0xff]
    %v349 = vld [vmem:[#allocation2 + $0x68] sm:$0xff]
    %v350 = vld [vmem:[#allocation2 + $0x70] sm:$0xff]
    %v351 = vld [vmem:[#allocation2 + $0x78] sm:$0xff]
    %v352 = vld [vmem:[#allocation2 + $0x80] sm:$0xff]
    %v353 = vld [vmem:[#allocation2 + $0x88] sm:$0xff]
    %v354 = vld [vmem:[#allocation2 + $0x90] sm:$0xff]
    %v355 = vld [vmem:[#allocation2 + $0x98] sm:$0xff]
    %v356 = vld [vmem:[#allocation2 + $0xa0] sm:$0xff]
    %v357 = vld [vmem:[#allocation2 + $0xa8] sm:$0xff]
    %v358 = vld [vmem:[#allocation2 + $0xb0] sm:$0xff]
    %v359 = vld [vmem:[#allocation2 + $0xb8] sm:$0xff]
    %v360 = vld [vmem:[#allocation2 + $0xc0] sm:$0xff]
    %v361 = vld [vmem:[#allocation2 + $0xc8] sm:$0xff]
    %v362 = vld [vmem:[#allocation2 + $0xd0] sm:$0xff]
    %v363 = vld [vmem:[#allocation2 + $0xd8] sm:$0xff]
    %v364 = vld [vmem:[#allocation2 + $0xe0] sm:$0xff]
    %v365 = vld [vmem:[#allocation2 + $0xe8] sm:$0xff]
    %v366 = vld [vmem:[#allocation2 + $0xf0] sm:$0xff]
    %v367 = vld [vmem:[#allocation2 + $0xf8] sm:$0xff]
    %v368 = vld [vmem:[#allocation2 + $0x100] sm:$0xff]
    %v369 = vld [vmem:[#allocation2 + $0x108] sm:$0xff]
    %v370 = vld [vmem:[#allocation2 + $0x110] sm:$0xff]
    %v371 = vld [vmem:[#allocation2 + $0x118] sm:$0xff]
    %v372 = vld [vmem:[#allocation2 + $0x120] sm:$0xff]
    %v373 = vld [vmem:[#allocation2 + $0x128] sm:$0xff]
    %v374 = vld [vmem:[#allocation2 + $0x130] sm:$0xff]
    %v375 = vld [vmem:[#allocation2 + $0x138] sm:$0xff]
    %v376 = vld [vmem:[#allocation2 + $0x140] sm:$0xff]
    %v377 = vld [vmem:[#allocation2 + $0x148] sm:$0xff]
    %v378 = vld [vmem:[#allocation2 + $0x150] sm:$0xff]
    %v379 = vld [vmem:[#allocation2 + $0x158] sm:$0xff]
    %v380 = vld [vmem:[#allocation2 + $0x160] sm:$0xff]
    %v381 = vld [vmem:[#allocation2 + $0x168] sm:$0xff]
    %v382 = vld [vmem:[#allocation2 + $0x170] sm:$0xff]
    %v383 = vld [vmem:[#allocation2 + $0x178] sm:$0xff]
    %v384 = vld [vmem:[#allocation2 + $0x180] sm:$0xff]
    %v385 = vld [vmem:[#allocation2 + $0x188] sm:$0xff]
    %v386 = vld [vmem:[#allocation2 + $0x190] sm:$0xff]
    %v387 = vld [vmem:[#allocation2 + $0x198] sm:$0xff]
    %v388 = vld [vmem:[#allocation2 + $0x1a0] sm:$0xff]
    %v389 = vld [vmem:[#allocation2 + $0x1a8] sm:$0xff]
    %v390 = vld [vmem:[#allocation2 + $0x1b0] sm:$0xff]
    %v391 = vld [vmem:[#allocation2 + $0x1b8] sm:$0xff]
    %v392 = vld [vmem:[#allocation2 + $0x1c0] sm:$0xff]
    %v393 = vld [vmem:[#allocation2 + $0x1c8] sm:$0xff]
    %v394 = vld [vmem:[#allocation2 + $0x1d0] sm:$0xff]
    %v395 = vld [vmem:[#allocation2 + $0x1d8] sm:$0xff]
    %v396 = vld [vmem:[#allocation2 + $0x1e0] sm:$0xff]
    %v397 = vld [vmem:[#allocation2 + $0x1e8] sm:$0xff]
    %v398 = vld [vmem:[#allocation2 + $0x1f0] sm:$0xff]
    %v399 = vld [vmem:[#allocation2 + $0x1f8] sm:$0xff]
    %400 = vmatprep.subr.mxu0 %v337
    %401 = vmatpush1.msra.mxu0 %v336
    %402 = vmatprep.subr.mxu0 %v339
    %403 = vmatpush1.msra.mxu0 %v338
    %404 = vmatprep.subr.mxu0 %v341
    %405 = vmatpush1.msra.mxu0 %v340
    %406 = vmatprep.subr.mxu0 %v343
    %407 = vmatpush1.msra.mxu0 %v342
    %408 = vmatprep.subr.mxu0 %v345
    %409 = vmatpush1.msra.mxu0 %v344
    %410 = vmatprep.subr.mxu0 %v347
    %411 = vmatpush1.msra.mxu0 %v346
    %412 = vmatprep.subr.mxu0 %v349
    %413 = vmatpush1.msra.mxu0 %v348
    %414 = vmatprep.subr.mxu0 %v351
    %415 = vmatpush1.msra.mxu0 %v350
    %416 = vmatprep.subr.mxu0 %v353
    %417 = vmatpush1.msra.mxu0 %v352
    %418 = vmatprep.subr.mxu0 %v355
    %419 = vmatpush1.msra.mxu0 %v354
    %420 = vmatprep.subr.mxu0 %v357
    %421 = vmatpush1.msra.mxu0 %v356
    %422 = vmatprep.subr.mxu0 %v359
    %423 = vmatpush1.msra.mxu0 %v358
    %424 = vmatprep.subr.mxu0 %v361
    %425 = vmatpush1.msra.mxu0 %v360
    %426 = vmatprep.subr.mxu0 %v363
    %427 = vmatpush1.msra.mxu0 %v362
    %428 = vmatprep.subr.mxu0 %v365
    %429 = vmatpush1.msra.mxu0 %v364
    %430 = vmatprep.subr.mxu0 %v367
    %431 = vmatpush1.msra.mxu0 %v366
    %432 = vmatprep.subr.mxu0 %v369
    %433 = vmatpush1.msra.mxu0 %v368
    %434 = vmatprep.subr.mxu0 %v371
    %435 = vmatpush1.msra.mxu0 %v370
    %436 = vmatprep.subr.mxu0 %v373
    %437 = vmatpush1.msra.mxu0 %v372
    %438 = vmatprep.subr.mxu0 %v375
    %439 = vmatpush1.msra.mxu0 %v374
    %440 = vmatprep.subr.mxu0 %v377
    %441 = vmatpush1.msra.mxu0 %v376
    %442 = vmatprep.subr.mxu0 %v379
    %443 = vmatpush1.msra.mxu0 %v378
    %444 = vmatprep.subr.mxu0 %v381
    %445 = vmatpush1.msra.mxu0 %v380
    %446 = vmatprep.subr.mxu0 %v383
    %447 = vmatpush1.msra.mxu0 %v382
    %448 = vmatprep.subr.mxu0 %v385
    %449 = vmatpush1.msra.mxu0 %v384
    %450 = vmatprep.subr.mxu0 %v387
    %451 = vmatpush1.msra.mxu0 %v386
    %452 = vmatprep.subr.mxu0 %v389
    %453 = vmatpush1.msra.mxu0 %v388
    %454 = vmatprep.subr.mxu0 %v391
    %455 = vmatpush1.msra.mxu0 %v390
    %456 = vmatprep.subr.mxu0 %v393
    %457 = vmatpush1.msra.mxu0 %v392
    %458 = vmatprep.subr.mxu0 %v395
    %459 = vmatpush1.msra.mxu0 %v394
    %460 = vmatprep.subr.mxu0 %v397
    %461 = vmatpush1.msra.mxu0 %v396
    %462 = vmatprep.subr.mxu0 %v399
    %463 = vmatpush1.msra.mxu0 %v398
    %464 = vmatprep.mubr.f32.mxu0 %v335
    %465 = vmatmul.mubr.f32.gmra.mrb[0].mxu0 %v334
    %v466 = vpop.f32.mrb[0].mxu0
    %v467 = vadd.f32 0.0, %v466
    %v468 = vpop.f32.mrb[0].mxu0
    %v469 = vadd.f32 0.0, %v468
    %470 = vdwg.mxu0
    %471 = vst [vmem:[#allocation8] sm:$0xff] %v467
    %472 = vst [vmem:[#allocation8 + $0x8] sm:$0xff] %v469
    // Predicated region
    $region18: #{tpu_custom_call.1} parent=1 // pred_check
      _
    $region19: #{tpu_custom_call.1} parent=1 // pred_check_branch
      %474 = sbr.rel (0) target = $region21
    $region20: #{tpu_custom_call.1} parent=1 // pred_region
      %s476 = ssub.s32 256, 256
      %477 = vsyncadd [#allocation5], %s476
      %s479 = sshll.u32 [#allocation8], 4
      %s480 = int_to_ptr.vmem [resolvable:$true] %s479
      %482 = dma.vmem_to_hbm [thread:$0]  %s480, 256, %s2, [#allocation5]
    $region21: #{tpu_custom_call.1} parent=1 // pred_fallthru
      _
    // Predicated region
    $region22: #{tpu_custom_call.1} parent=1 // pred_check
      _
    $region23: #{tpu_custom_call.1} parent=1 // pred_check_branch
      %484 = sbr.rel (0) target = $region25
    $region24: #{tpu_custom_call.1} parent=1 // pred_region
      %485 = dma.done [#allocation5], 256
    $region25: #{tpu_custom_call.1} parent=1 // pred_fallthru
      _
    %486 = vsyncpa [#allocation4], 1
    %487 = vsyncpa [#allocation7], 1
    %488 = vsyncpa [#allocation5], 1

</llo_original>
